<compile_context>
chip_gen: v6e
topology: v6e:2x2x1
jax: 0.10.0
libtpu: 0.0.40
codegen_flags: <defaults>
</compile_context>

<pallas_src>
import jax
import jax.numpy as jnp
from jax.experimental import pallas as pl
from jax.experimental.pallas import tpu as pltpu

N_ACTION = 2
N_ATOM = 51
N_STATE = 4
BATCH = 32            # matches `batch_size` in the reference module
HIDDEN = 256

N_STATE_PAD = 8                  # sublane-friendly fc1 weight rows (rows 4..7 zero)
OUT = N_ACTION * N_ATOM          # 102
OUT_PAD = 128                    # lane-dense output width


def qnet_kernel(x_ref, w1_ref, wp_ref, bp_ref, out_ref):
    TB = x_ref.shape[0]

    x = x_ref[...]                               # (TB, 4) f32
    w1 = w1_ref[...].astype(jnp.float32)         # (8, 256) bf16 -> f32, rows 4..7 zero
    bp = bp_ref[...]                             # (8, 256) f32 bias slab

    # --- fc1 + ReLU: K=4 -> VPU broadcast-FMAs (MXU not worth a push here) --
    h = jnp.broadcast_to(bp[0:1, :], (TB, HIDDEN))
    for i in range(N_STATE):
        h = h + x[:, i:i + 1] * w1[i:i + 1, :]
    h = jnp.maximum(h, 0.0).astype(jnp.bfloat16)

    # --- fc2 + ReLU (bf16 MXU operands, f32 accumulate) ---------------------
    h = jnp.dot(h, wp_ref[:, 0:HIDDEN],
                preferred_element_type=jnp.float32) + bp[1:2, :]
    h = jnp.maximum(h, 0.0).astype(jnp.bfloat16)

    # --- fc3 + ReLU ----------------------------------------------------------
    h = jnp.dot(h, wp_ref[:, HIDDEN:2 * HIDDEN],
                preferred_element_type=jnp.float32) + bp[2:3, :]
    h = jnp.maximum(h, 0.0).astype(jnp.bfloat16)

    # --- fc_q (output padded to 128 lanes; pad weight cols / bias are zero) --
    q = jnp.dot(h, wp_ref[:, 2 * HIDDEN:2 * HIDDEN + OUT_PAD],
                preferred_element_type=jnp.float32) + bp[3:4, 0:OUT_PAD]
    # q: (TB, 128); lanes 0..50 -> action-0 logits, 51..101 -> action-1, rest pad.

    # --- two per-action softmaxes with lane masks; one full-width store -----
    lane = jax.lax.broadcasted_iota(jnp.int32, (TB, OUT_PAD), 1)
    g0 = lane < N_ATOM
    g1 = jnp.logical_and(lane >= N_ATOM, lane < OUT)
    neg = jnp.float32(-1e30)

    m0 = jnp.max(jnp.where(g0, q, neg), axis=-1, keepdims=True)
    m1 = jnp.max(jnp.where(g1, q, neg), axis=-1, keepdims=True)
    e = jnp.exp(q - jnp.where(g0, m0, m1))
    s0 = jnp.sum(jnp.where(g0, e, 0.0), axis=-1, keepdims=True)
    s1 = jnp.sum(jnp.where(g1, e, 0.0), axis=-1, keepdims=True)

    r0 = pl.reciprocal(s0, approx=True)
    r0 = r0 * (2.0 - s0 * r0)                    # one Newton refinement step
    r1 = pl.reciprocal(s1, approx=True)
    r1 = r1 * (2.0 - s1 * r1)

    p = e * jnp.where(g0, r0, r1)
    # zero the pad lanes so the stored (TB, 128) tile is clean (no +inf leakage)
    out_ref[...] = jnp.where(lane < OUT, p, 0.0)


def pack_params(params):
    """Pack (w1,b1,...,wq,bq) [weights already (in, out), f32] into 3 kernel operands."""
    w1, b1, w2, b2, w3, b3, wq, bq = params

    w1_p = jnp.zeros((N_STATE_PAD, HIDDEN), jnp.bfloat16)
    w1_p = w1_p.at[:N_STATE, :].set(w1.astype(jnp.bfloat16))

    wq_p = jnp.zeros((HIDDEN, OUT_PAD), jnp.float32).at[:, :OUT].set(wq)
    w_pack = jnp.concatenate([w2, w3, wq_p], axis=1).astype(jnp.bfloat16)  # (256, 640)

    b_pack = jnp.zeros((8, HIDDEN), jnp.float32)
    b_pack = b_pack.at[0, :].set(b1)
    b_pack = b_pack.at[1, :].set(b2)
    b_pack = b_pack.at[2, :].set(b3)
    b_pack = b_pack.at[3, :OUT].set(bq)
    return w1_p, w_pack, b_pack


def qnetwork_forward(state, packed, *, block_batch=256):
    """state: (B, 4) (or (4,)) f32 -> (B, 2, 51) (or (2, 51)) per-action softmax."""
    w1_p, w_pack, b_pack = packed

    single = state.ndim == 1
    if single:
        state = state.reshape(1, N_STATE)
    B = state.shape[0]

    # Batch tiling: TB rows per grid step, weights stay VMEM-resident across steps.
    B_pad = -(-B // 8) * 8
    TB = min(B_pad, max(8, block_batch))
    TB = -(-TB // 8) * 8
    n_tiles = -(-B_pad // TB)
    B_grid = n_tiles * TB

    x = state.astype(jnp.float32)
    if B_grid != B:
        x = jnp.pad(x, ((0, B_grid - B), (0, 0)))

    # Only worth a dual-TensorCore (v7x) split for large batches; otherwise keep
    # the single-core sequential form (per-core weight re-DMA / step overhead).
    sem = "parallel" if B_grid >= 1024 else "arbitrary"

    q_flat = pl.pallas_call(
        qnet_kernel,
        out_shape=jax.ShapeDtypeStruct((B_grid, OUT_PAD), jnp.float32),
        grid=(n_tiles,),
        in_specs=[
            pl.BlockSpec((TB, N_STATE), lambda i: (i, 0)),     # per-tile state
            pl.BlockSpec(w1_p.shape, lambda i: (0, 0)),        # constant index_map:
            pl.BlockSpec(w_pack.shape, lambda i: (0, 0)),      #   params DMA'd once,
            pl.BlockSpec(b_pack.shape, lambda i: (0, 0)),      #   reused every tile
        ],
        out_specs=pl.BlockSpec((TB, OUT_PAD), lambda i: (i, 0)),
        compiler_params=pltpu.CompilerParams(dimension_semantics=(sem,)),
    )(x, w1_p, w_pack, b_pack)

    q = q_flat[:B, :OUT].reshape(B, N_ACTION, N_ATOM)
    if single:
        # mirrors the PyTorch `.view(N_ACTION, N_ATOM)` (non-batch) branch
        return q[0]
    return q


def init_params(key):
    """PyTorch nn.Linear default init; weights stored transposed as (in, out), f32."""
    def linear(k, fan_in, fan_out):
        kw, kb = jax.random.split(k)
        bound = 1.0 / jnp.sqrt(jnp.float32(fan_in))
        w = jax.random.uniform(kw, (fan_in, fan_out), jnp.float32, -bound, bound)
        b = jax.random.uniform(kb, (fan_out,), jnp.float32, -bound, bound)
        return w, b

    k1, k2, k3, k4 = jax.random.split(key, 4)
    w1, b1 = linear(k1, N_STATE, HIDDEN)
    w2, b2 = linear(k2, HIDDEN, HIDDEN)
    w3, b3 = linear(k3, HIDDEN, HIDDEN)
    wq, bq = linear(k4, HIDDEN, OUT)
    return (w1, b1, w2, b2, w3, b3, wq, bq)


def ref_forward(state, params):
    """Pure-JAX reference following the same bf16-weight / f32-accumulate path."""
    w1, b1, w2, b2, w3, b3, wq, bq = params
    bf, f32 = jnp.bfloat16, jnp.float32
    h = state.astype(f32) @ w1.astype(bf).astype(f32) + b1
    h = jnp.maximum(h, 0.0).astype(bf)
    h = jnp.dot(h, w2.astype(bf), preferred_element_type=f32) + b2
    h = jnp.maximum(h, 0.0).astype(bf)
    h = jnp.dot(h, w3.astype(bf), preferred_element_type=f32) + b3
    h = jnp.maximum(h, 0.0).astype(bf)
    q = jnp.dot(h, wq.astype(bf), preferred_element_type=f32) + bq
    return jax.nn.softmax(q.reshape(-1, N_ACTION, N_ATOM), axis=-1)


if __name__ == "__main__":
    key = jax.random.PRNGKey(0)
    kp, kx = jax.random.split(key)
    params = init_params(kp)
    packed = pack_params(params)

    # --- batched branch (matches `batch_size` in the reference module) ------
    state = jax.random.normal(kx, (BATCH, N_STATE), jnp.float32)
    q = jax.block_until_ready(qnetwork_forward(state, packed))
    assert q.shape == (BATCH, N_ACTION, N_ATOM)
    sums = jnp.sum(q, axis=-1)
    assert bool(jnp.all(jnp.abs(sums - 1.0) < 1e-4)), "softmax rows do not sum to 1"
    q_ref = ref_forward(state, params)
    assert bool(jnp.all(jnp.abs(q - q_ref) < 2e-3)), "mismatch vs reference"

    # --- multi-tile grid path: params DMA'd once, reused across 3 batch tiles
    state_big = jax.random.normal(kx, (96, N_STATE), jnp.float32)
    q_big = jax.block_until_ready(qnetwork_forward(state_big, packed, block_batch=32))
    assert q_big.shape == (96, N_ACTION, N_ATOM)
    q_big_ref = ref_forward(state_big, params)
    assert bool(jnp.all(jnp.abs(q_big - q_big_ref) < 2e-3)), "multi-tile mismatch"

    # --- non-batched branch of the PyTorch forward ---------------------------
    q1 = jax.block_until_ready(qnetwork_forward(state[0], packed))
    assert q1.shape == (N_ACTION, N_ATOM)
    assert bool(jnp.all(jnp.abs(q1 - q_ref[0]) < 2e-3)), "single-state mismatch"

    print("KERNEL_OK")
</pallas_src>

<mosaic_0001>
module attributes {stable_mosaic.version = 11 : i64} {
  func.func @qnet_kernel(%arg0: i32, %arg1: memref<32x4xf32, #tpu.memory_space<vmem>>, %arg2: memref<8x256xbf16, #tpu.memory_space<vmem>>, %arg3: memref<256x640xbf16, #tpu.memory_space<vmem>>, %arg4: memref<8x256xf32, #tpu.memory_space<vmem>>, %arg5: memref<32x128xf32, #tpu.memory_space<vmem>>) attributes {dimension_semantics = [#tpu.dimension_semantics<arbitrary>], iteration_bounds = array<i64: 1>, scalar_prefetch = 0 : i64, scratch_operands = 0 : i64, tpu.core_type = #tpu.core_type<tc>, window_params = [{transform_indices = @transform_0, window_bounds = array<i64: 32, 4>}, {pipeline_mode = #tpu.pipeline_mode<synchronous>, transform_indices = @transform_1, window_bounds = array<i64: 8, 256>}, {pipeline_mode = #tpu.pipeline_mode<synchronous>, transform_indices = @transform_2, window_bounds = array<i64: 256, 640>}, {pipeline_mode = #tpu.pipeline_mode<synchronous>, transform_indices = @transform_3, window_bounds = array<i64: 8, 256>}, {transform_indices = @transform_4, window_bounds = array<i64: 32, 128>}]} {
    %c0 = arith.constant 0 : index
    %c0_0 = arith.constant 0 : index
    %0 = vector.load %arg1[%c0, %c0_0] : memref<32x4xf32, #tpu.memory_space<vmem>>, vector<32x4xf32>
    %c0_1 = arith.constant 0 : index
    %c0_2 = arith.constant 0 : index
    %1 = vector.load %arg2[%c0_1, %c0_2] : memref<8x256xbf16, #tpu.memory_space<vmem>>, vector<8x256xbf16>
    %2 = arith.extf %1 : vector<8x256xbf16> to vector<8x256xf32>
    %c0_3 = arith.constant 0 : index
    %c0_4 = arith.constant 0 : index
    %3 = vector.load %arg4[%c0_3, %c0_4] : memref<8x256xf32, #tpu.memory_space<vmem>>, vector<8x256xf32>
    %4 = vector.extract_strided_slice %3 {offsets = [0, 0], sizes = [1, 256], strides = [1, 1]} : vector<8x256xf32> to vector<1x256xf32>
    %5 = vector.shape_cast %4 : vector<1x256xf32> to vector<1x256xf32>
    %6 = vector.broadcast %5 : vector<1x256xf32> to vector<32x256xf32>
    %7 = vector.extract_strided_slice %0 {offsets = [0, 0], sizes = [32, 1], strides = [1, 1]} : vector<32x4xf32> to vector<32x1xf32>
    %8 = vector.extract_strided_slice %2 {offsets = [0, 0], sizes = [1, 256], strides = [1, 1]} : vector<8x256xf32> to vector<1x256xf32>
    %9 = vector.broadcast %7 : vector<32x1xf32> to vector<32x256xf32>
    %10 = vector.broadcast %8 : vector<1x256xf32> to vector<32x256xf32>
    %11 = arith.mulf %9, %10 : vector<32x256xf32>
    %12 = arith.addf %6, %11 : vector<32x256xf32>
    %13 = vector.extract_strided_slice %0 {offsets = [0, 1], sizes = [32, 1], strides = [1, 1]} : vector<32x4xf32> to vector<32x1xf32>
    %14 = vector.extract_strided_slice %2 {offsets = [1, 0], sizes = [1, 256], strides = [1, 1]} : vector<8x256xf32> to vector<1x256xf32>
    %15 = vector.broadcast %13 : vector<32x1xf32> to vector<32x256xf32>
    %16 = vector.broadcast %14 : vector<1x256xf32> to vector<32x256xf32>
    %17 = arith.mulf %15, %16 : vector<32x256xf32>
    %18 = arith.addf %12, %17 : vector<32x256xf32>
    %19 = vector.extract_strided_slice %0 {offsets = [0, 2], sizes = [32, 1], strides = [1, 1]} : vector<32x4xf32> to vector<32x1xf32>
    %20 = vector.extract_strided_slice %2 {offsets = [2, 0], sizes = [1, 256], strides = [1, 1]} : vector<8x256xf32> to vector<1x256xf32>
    %21 = vector.broadcast %19 : vector<32x1xf32> to vector<32x256xf32>
    %22 = vector.broadcast %20 : vector<1x256xf32> to vector<32x256xf32>
    %23 = arith.mulf %21, %22 : vector<32x256xf32>
    %24 = arith.addf %18, %23 : vector<32x256xf32>
    %25 = vector.extract_strided_slice %0 {offsets = [0, 3], sizes = [32, 1], strides = [1, 1]} : vector<32x4xf32> to vector<32x1xf32>
    %26 = vector.extract_strided_slice %2 {offsets = [3, 0], sizes = [1, 256], strides = [1, 1]} : vector<8x256xf32> to vector<1x256xf32>
    %27 = vector.broadcast %25 : vector<32x1xf32> to vector<32x256xf32>
    %28 = vector.broadcast %26 : vector<1x256xf32> to vector<32x256xf32>
    %29 = arith.mulf %27, %28 : vector<32x256xf32>
    %30 = arith.addf %24, %29 : vector<32x256xf32>
    %cst = arith.constant 0.000000e+00 : f32
    %31 = vector.broadcast %cst : f32 to vector<32x256xf32>
    %32 = arith.maximumf %30, %31 : vector<32x256xf32>
    %33 = arith.truncf %32 : vector<32x256xf32> to vector<32x256xbf16>
    %c0_5 = arith.constant 0 : index
    %c0_6 = arith.constant 0 : index
    %34 = vector.load %arg3[%c0_5, %c0_6] : memref<256x640xbf16, #tpu.memory_space<vmem>>, vector<256x256xbf16>
    %cst_7 = arith.constant dense<0.000000e+00> : vector<32x256xf32>
    %35 = tpu.matmul %33, %34, %cst_7 {dimension_numbers = #tpu.dot_dimension_numbers<[1], [0], [0], [1], [0, 0, 1, 1], [], []>} : vector<32x256xbf16>, vector<256x256xbf16>, vector<32x256xf32> -> vector<32x256xf32>
    %36 = vector.extract_strided_slice %3 {offsets = [1, 0], sizes = [1, 256], strides = [1, 1]} : vector<8x256xf32> to vector<1x256xf32>
    %37 = vector.broadcast %36 : vector<1x256xf32> to vector<32x256xf32>
    %38 = arith.addf %35, %37 : vector<32x256xf32>
    %cst_8 = arith.constant 0.000000e+00 : f32
    %39 = vector.broadcast %cst_8 : f32 to vector<32x256xf32>
    %40 = arith.maximumf %38, %39 : vector<32x256xf32>
    %41 = arith.truncf %40 : vector<32x256xf32> to vector<32x256xbf16>
    %c0_9 = arith.constant 0 : index
    %c256 = arith.constant 256 : index
    %42 = vector.load %arg3[%c0_9, %c256] : memref<256x640xbf16, #tpu.memory_space<vmem>>, vector<256x256xbf16>
    %cst_10 = arith.constant dense<0.000000e+00> : vector<32x256xf32>
    %43 = tpu.matmul %41, %42, %cst_10 {dimension_numbers = #tpu.dot_dimension_numbers<[1], [0], [0], [1], [0, 0, 1, 1], [], []>} : vector<32x256xbf16>, vector<256x256xbf16>, vector<32x256xf32> -> vector<32x256xf32>
    %44 = vector.extract_strided_slice %3 {offsets = [2, 0], sizes = [1, 256], strides = [1, 1]} : vector<8x256xf32> to vector<1x256xf32>
    %45 = vector.broadcast %44 : vector<1x256xf32> to vector<32x256xf32>
    %46 = arith.addf %43, %45 : vector<32x256xf32>
    %cst_11 = arith.constant 0.000000e+00 : f32
    %47 = vector.broadcast %cst_11 : f32 to vector<32x256xf32>
    %48 = arith.maximumf %46, %47 : vector<32x256xf32>
    %49 = arith.truncf %48 : vector<32x256xf32> to vector<32x256xbf16>
    %c0_12 = arith.constant 0 : index
    %c512 = arith.constant 512 : index
    %50 = vector.load %arg3[%c0_12, %c512] : memref<256x640xbf16, #tpu.memory_space<vmem>>, vector<256x128xbf16>
    %cst_13 = arith.constant dense<0.000000e+00> : vector<32x128xf32>
    %51 = tpu.matmul %49, %50, %cst_13 {dimension_numbers = #tpu.dot_dimension_numbers<[1], [0], [0], [1], [0, 0, 1, 1], [], []>} : vector<32x256xbf16>, vector<256x128xbf16>, vector<32x128xf32> -> vector<32x128xf32>
    %52 = vector.extract_strided_slice %3 {offsets = [3, 0], sizes = [1, 128], strides = [1, 1]} : vector<8x256xf32> to vector<1x128xf32>
    %53 = vector.broadcast %52 : vector<1x128xf32> to vector<32x128xf32>
    %54 = arith.addf %51, %53 : vector<32x128xf32>
    %55 = tpu.iota {dimensions = array<i32: 1>} : vector<32x128xi32>
    %c51_i32 = arith.constant 51 : i32
    %56 = vector.broadcast %c51_i32 : i32 to vector<32x128xi32>
    %57 = arith.cmpi slt, %55, %56 : vector<32x128xi32>
    %c51_i32_14 = arith.constant 51 : i32
    %58 = vector.broadcast %c51_i32_14 : i32 to vector<32x128xi32>
    %59 = arith.cmpi sge, %55, %58 : vector<32x128xi32>
    %c102_i32 = arith.constant 102 : i32
    %60 = vector.broadcast %c102_i32 : i32 to vector<32x128xi32>
    %61 = arith.cmpi slt, %55, %60 : vector<32x128xi32>
    %62 = arith.andi %59, %61 : vector<32x128xi1>
    %cst_15 = arith.constant -1.000000e+30 : f32
    %63 = vector.broadcast %cst_15 : f32 to vector<32x128xf32>
    %64 = arith.select %57, %54, %63 : vector<32x128xi1>, vector<32x128xf32>
    %cst_16 = arith.constant dense<0xFF800000> : vector<32xf32>
    %65 = vector.multi_reduction <maximumf>, %64, %cst_16 [1] : vector<32x128xf32> to vector<32xf32>
    %66 = vector.shape_cast %65 : vector<32xf32> to vector<32x1xf32>
    %cst_17 = arith.constant -1.000000e+30 : f32
    %67 = vector.broadcast %cst_17 : f32 to vector<32x128xf32>
    %68 = arith.select %62, %54, %67 : vector<32x128xi1>, vector<32x128xf32>
    %cst_18 = arith.constant dense<0xFF800000> : vector<32xf32>
    %69 = vector.multi_reduction <maximumf>, %68, %cst_18 [1] : vector<32x128xf32> to vector<32xf32>
    %70 = vector.shape_cast %69 : vector<32xf32> to vector<32x1xf32>
    %71 = vector.shape_cast %66 : vector<32x1xf32> to vector<32x1xf32>
    %72 = vector.broadcast %71 : vector<32x1xf32> to vector<32x128xf32>
    %73 = vector.shape_cast %70 : vector<32x1xf32> to vector<32x1xf32>
    %74 = vector.broadcast %73 : vector<32x1xf32> to vector<32x128xf32>
    %75 = arith.select %57, %72, %74 : vector<32x128xi1>, vector<32x128xf32>
    %76 = arith.subf %54, %75 : vector<32x128xf32>
    %77 = math.exp %76 : vector<32x128xf32>
    %cst_19 = arith.constant 0.000000e+00 : f32
    %78 = vector.broadcast %cst_19 : f32 to vector<32x128xf32>
    %79 = arith.select %57, %77, %78 : vector<32x128xi1>, vector<32x128xf32>
    %cst_20 = arith.constant dense<0.000000e+00> : vector<32xf32>
    %80 = vector.multi_reduction <add>, %79, %cst_20 [1] : vector<32x128xf32> to vector<32xf32>
    %81 = vector.shape_cast %80 : vector<32xf32> to vector<32x1xf32>
    %cst_21 = arith.constant 0.000000e+00 : f32
    %82 = vector.broadcast %cst_21 : f32 to vector<32x128xf32>
    %83 = arith.select %62, %77, %82 : vector<32x128xi1>, vector<32x128xf32>
    %cst_22 = arith.constant dense<0.000000e+00> : vector<32xf32>
    %84 = vector.multi_reduction <add>, %83, %cst_22 [1] : vector<32x128xf32> to vector<32xf32>
    %85 = vector.shape_cast %84 : vector<32xf32> to vector<32x1xf32>
    %86 = tpu.reciprocal %81 {approx = true} : vector<32x1xf32> -> vector<32x1xf32>
    %87 = arith.mulf %81, %86 : vector<32x1xf32>
    %cst_23 = arith.constant 2.000000e+00 : f32
    %88 = vector.broadcast %cst_23 : f32 to vector<32x1xf32>
    %89 = arith.subf %88, %87 : vector<32x1xf32>
    %90 = arith.mulf %86, %89 : vector<32x1xf32>
    %91 = tpu.reciprocal %85 {approx = true} : vector<32x1xf32> -> vector<32x1xf32>
    %92 = arith.mulf %85, %91 : vector<32x1xf32>
    %cst_24 = arith.constant 2.000000e+00 : f32
    %93 = vector.broadcast %cst_24 : f32 to vector<32x1xf32>
    %94 = arith.subf %93, %92 : vector<32x1xf32>
    %95 = arith.mulf %91, %94 : vector<32x1xf32>
    %96 = vector.shape_cast %90 : vector<32x1xf32> to vector<32x1xf32>
    %97 = vector.broadcast %96 : vector<32x1xf32> to vector<32x128xf32>
    %98 = vector.shape_cast %95 : vector<32x1xf32> to vector<32x1xf32>
    %99 = vector.broadcast %98 : vector<32x1xf32> to vector<32x128xf32>
    %100 = arith.select %57, %97, %99 : vector<32x128xi1>, vector<32x128xf32>
    %101 = arith.mulf %77, %100 : vector<32x128xf32>
    %c102_i32_25 = arith.constant 102 : i32
    %102 = vector.broadcast %c102_i32_25 : i32 to vector<32x128xi32>
    %103 = arith.cmpi slt, %55, %102 : vector<32x128xi32>
    %cst_26 = arith.constant 0.000000e+00 : f32
    %104 = vector.broadcast %cst_26 : f32 to vector<32x128xf32>
    %105 = arith.select %103, %101, %104 : vector<32x128xi1>, vector<32x128xf32>
    %c0_27 = arith.constant 0 : index
    %c0_28 = arith.constant 0 : index
    %106 = vector.load %arg5[%c0_27, %c0_28] : memref<32x128xf32, #tpu.memory_space<vmem>>, vector<32x128xf32>
    tpu.vector_store %arg5[%c0_27, %c0_28], %105 {strides = array<i32>} : memref<32x128xf32, #tpu.memory_space<vmem>>, vector<32x128xf32>,
    return
  }
  func.func @transform_0(%arg0: i32) -> (i32, i32) {
    %c0_i32 = arith.constant 0 : i32
    %c0_i32_0 = arith.constant 0 : i32
    return %arg0, %c0_i32 : i32, i32
  }
  func.func @transform_1(%arg0: i32) -> (i32, i32) {
    %c0_i32 = arith.constant 0 : i32
    %c0_i32_0 = arith.constant 0 : i32
    %c0_i32_1 = arith.constant 0 : i32
    return %c0_i32, %c0_i32_0 : i32, i32
  }
  func.func @transform_2(%arg0: i32) -> (i32, i32) {
    %c0_i32 = arith.constant 0 : i32
    %c0_i32_0 = arith.constant 0 : i32
    %c0_i32_1 = arith.constant 0 : i32
    return %c0_i32, %c0_i32_0 : i32, i32
  }
  func.func @transform_3(%arg0: i32) -> (i32, i32) {
    %c0_i32 = arith.constant 0 : i32
    %c0_i32_0 = arith.constant 0 : i32
    %c0_i32_1 = arith.constant 0 : i32
    return %c0_i32, %c0_i32_0 : i32, i32
  }
  func.func @transform_4(%arg0: i32) -> (i32, i32) {
    %c0_i32 = arith.constant 0 : i32
    %c0_i32_0 = arith.constant 0 : i32
    return %arg0, %c0_i32 : i32, i32
  }
}

</mosaic_0001>

<llo_original>
// kernel: tpu_custom_call.1
$region0: #{tpu_custom_call.1}
  #allocation0 [shape = 'u32[]', space=smem, size = 0x4, offset = 0x4, fixed_abs, tag = 'smem constant byte address 0x4 - core index']
  #allocation1 [shape = 'u32[144,128]{1,0:T(1,128)}', space=vmem, size = 0x12000, scoped, tag = 'internal scratch']
  %s0 = inlined_call_operand.vmem [shape: f32[32,4], index: 0, kind: input, shape index: {}]
  %s1 = inlined_call_operand.vmem [shape: bf16[8,256], index: 1, kind: input, shape index: {}]
  %s2 = inlined_call_operand.hbm [shape: bf16[256,640], index: 2, kind: input, shape index: {}]
  %s3 = inlined_call_operand.vmem [shape: f32[8,256], index: 3, kind: input, shape index: {}]
  %s4 = inlined_call_operand.hbm [shape: f32[32,128], index: 4, kind: output, shape index: {}]
  %s5 = sld [smem:[#allocation0]]
  $region30: #{tpu_custom_call.1} parent=0
    _
  %s7 = ssub.s32 1, %s5
  %s8 = scalar_select 0, %s7, %s5
  $region1: #{tpu_custom_call.1} parent=0
    #allocation2 [shape = 'u8[327680]{0}', space=vmem, size = 0x50000, scoped, tag = 'input window, operand 2, single buffered']
    #allocation3 [shape = 's32[1]{0}', space=sflag, size = 0x4, scoped, tag = 'scoped memory for tpu_custom_call.1']
    #allocation4 [shape = 's32[1]{0}', space=sflag, size = 0x4, scoped, tag = 'scoped memory for tpu_custom_call.1']
    #allocation5 [shape = 'u8[16384]{0}', space=vmem, size = 0x4000, scoped, tag = 'output window, operand 0, single buffered']
    %9 = vsyncpa [#allocation3], 0
    %10 = vsyncpa [#allocation4], 0
    // Predicated region
    $region2: #{tpu_custom_call.1} parent=1 // pred_check
      _
    $region3: #{tpu_custom_call.1} parent=1 // pred_check_branch
      %12 = sbr.rel (0) target = $region5
    $region4: #{tpu_custom_call.1} parent=1 // pred_region
      _
    $region5: #{tpu_custom_call.1} parent=1 // pred_fallthru
      _
    // Predicated region
    $region6: #{tpu_custom_call.1} parent=1 // pred_check
      _
    $region7: #{tpu_custom_call.1} parent=1 // pred_check_branch
      %14 = sbr.rel (0) target = $region9
    $region8: #{tpu_custom_call.1} parent=1 // pred_region
      _
    $region9: #{tpu_custom_call.1} parent=1 // pred_fallthru
      _
    // Predicated region
    $region10: #{tpu_custom_call.1} parent=1 // pred_check
      _
    $region11: #{tpu_custom_call.1} parent=1 // pred_check_branch
      %16 = sbr.rel (0) target = $region13
    $region12: #{tpu_custom_call.1} parent=1 // pred_region
      %s18 = ssub.s32 10240, 10240
      %19 = vsyncadd [#allocation3], %s18
      %s20 = sshll.u32 [#allocation2], 4
      %s21 = int_to_ptr.vmem [resolvable:$true] %s20
      %26 = dma.hbm_to_vmem [thread:$0]  %s2, 10240, %s21, [#allocation3], 320, 320, 20
    $region13: #{tpu_custom_call.1} parent=1 // pred_fallthru
      _
    // Predicated region
    $region14: #{tpu_custom_call.1} parent=1 // pred_check
      _
    $region15: #{tpu_custom_call.1} parent=1 // pred_check_branch
      %28 = sbr.rel (0) target = $region17
    $region16: #{tpu_custom_call.1} parent=1 // pred_region
      _
    $region17: #{tpu_custom_call.1} parent=1 // pred_fallthru
      _
    // Predicated region
    $region18: #{tpu_custom_call.1} parent=1 // pred_check
      _
    $region19: #{tpu_custom_call.1} parent=1 // pred_check_branch
      %30 = sbr.rel (0) target = $region21
    $region20: #{tpu_custom_call.1} parent=1 // pred_region
      %31 = dma.done [#allocation3], 10240
    $region21: #{tpu_custom_call.1} parent=1 // pred_fallthru
      _
    %v33 = vld [vmem:[%s0] sm:$0xff]
    %v34 = vld [vmem:[%s0 + $0x8] sm:$0xff]
    %v35 = vld [vmem:[%s0 + $0x10] sm:$0xff]
    %v36 = vld [vmem:[%s0 + $0x18] sm:$0xff]
    %v37 = vld [vmem:[%s1] sm:$0xff]
    %v38 = vunpack.c.l.bf16 %v37
    %v39 = vunpack.c.h.bf16 %v37
    %v40 = vld [vmem:[%s3] sm:$0xff]
    %v41 = vld [vmem:[%s3 + $0x8] sm:$0xff]
    %v42 = vlaneseq
    %v43 = vshrl.u32 %v42, 7
    %v44 = vsub.s32 0, %v43
    %v45 = vrot.slane %v40, %v44
    %v46 = vlaneseq
    %v47 = vshrl.u32 %v46, 7
    %v48 = vsub.s32 0, %v47
    %v49 = vrot.slane %v41, %v48
    %51 = vset.pattern.permute.xlu0 0
    %52 = vperm.xlu0 %51, %v33
    %v53 = vpop.permute.xlu0 %52
    %56 = vset.pattern.permute.xlu0 0
    %57 = vperm.xlu0 %56, %v34
    %v58 = vpop.permute.xlu0 %57
    %61 = vset.pattern.permute.xlu0 0
    %62 = vperm.xlu0 %61, %v35
    %v63 = vpop.permute.xlu0 %62
    %66 = vset.pattern.permute.xlu0 0
    %67 = vperm.xlu0 %66, %v36
    %v68 = vpop.permute.xlu0 %67
    %v70 = vlaneseq
    %v71 = vshrl.u32 %v70, 7
    %v72 = vsub.s32 0, %v71
    %v73 = vrot.slane %v38, %v72
    %v74 = vlaneseq
    %v75 = vshrl.u32 %v74, 7
    %v76 = vsub.s32 0, %v75
    %v77 = vrot.slane %v39, %v76
    %v78 = vmul.f32 %v53, %v73
    %v79 = vmul.f32 %v53, %v77
    %v80 = vmul.f32 %v58, %v73
    %v81 = vmul.f32 %v58, %v77
    %v82 = vmul.f32 %v63, %v73
    %v83 = vmul.f32 %v63, %v77
    %v84 = vmul.f32 %v68, %v73
    %v85 = vmul.f32 %v68, %v77
    %v86 = vadd.f32 %v45, %v78
    %v87 = vadd.f32 %v49, %v79
    %v88 = vadd.f32 %v45, %v80
    %v89 = vadd.f32 %v49, %v81
    %v90 = vadd.f32 %v45, %v82
    %v91 = vadd.f32 %v49, %v83
    %v92 = vadd.f32 %v45, %v84
    %v93 = vadd.f32 %v49, %v85
    %94 = vset.pattern.permute.xlu0 1
    %95 = vperm.xlu0 %94, %v33
    %v96 = vpop.permute.xlu0 %95
    %98 = vset.pattern.permute.xlu0 1
    %99 = vperm.xlu0 %98, %v34
    %v100 = vpop.permute.xlu0 %99
    %102 = vset.pattern.permute.xlu0 1
    %103 = vperm.xlu0 %102, %v35
    %v104 = vpop.permute.xlu0 %103
    %106 = vset.pattern.permute.xlu0 1
    %107 = vperm.xlu0 %106, %v36
    %v108 = vpop.permute.xlu0 %107
    %v110 = vlaneseq
    %v111 = vshrl.u32 %v110, 7
    %v112 = vsub.s32 1, %v111
    %v113 = vrot.slane %v38, %v112
    %v114 = vlaneseq
    %v115 = vshrl.u32 %v114, 7
    %v116 = vsub.s32 1, %v115
    %v117 = vrot.slane %v39, %v116
    %v118 = vmul.f32 %v96, %v113
    %v119 = vmul.f32 %v96, %v117
    %v120 = vmul.f32 %v100, %v113
    %v121 = vmul.f32 %v100, %v117
    %v122 = vmul.f32 %v104, %v113
    %v123 = vmul.f32 %v104, %v117
    %v124 = vmul.f32 %v108, %v113
    %v125 = vmul.f32 %v108, %v117
    %v126 = vadd.f32 %v86, %v118
    %v127 = vadd.f32 %v87, %v119
    %v128 = vadd.f32 %v88, %v120
    %v129 = vadd.f32 %v89, %v121
    %v130 = vadd.f32 %v90, %v122
    %v131 = vadd.f32 %v91, %v123
    %v132 = vadd.f32 %v92, %v124
    %v133 = vadd.f32 %v93, %v125
    %134 = vset.pattern.permute.xlu0 2
    %135 = vperm.xlu0 %134, %v33
    %v136 = vpop.permute.xlu0 %135
    %138 = vset.pattern.permute.xlu0 2
    %139 = vperm.xlu0 %138, %v34
    %v140 = vpop.permute.xlu0 %139
    %142 = vset.pattern.permute.xlu0 2
    %143 = vperm.xlu0 %142, %v35
    %v144 = vpop.permute.xlu0 %143
    %146 = vset.pattern.permute.xlu0 2
    %147 = vperm.xlu0 %146, %v36
    %v148 = vpop.permute.xlu0 %147
    %v150 = vlaneseq
    %v151 = vshrl.u32 %v150, 7
    %v152 = vsub.s32 2, %v151
    %v153 = vrot.slane %v38, %v152
    %v154 = vlaneseq
    %v155 = vshrl.u32 %v154, 7
    %v156 = vsub.s32 2, %v155
    %v157 = vrot.slane %v39, %v156
    %v158 = vmul.f32 %v136, %v153
    %v159 = vmul.f32 %v136, %v157
    %v160 = vmul.f32 %v140, %v153
    %v161 = vmul.f32 %v140, %v157
    %v162 = vmul.f32 %v144, %v153
    %v163 = vmul.f32 %v144, %v157
    %v164 = vmul.f32 %v148, %v153
    %v165 = vmul.f32 %v148, %v157
    %v166 = vadd.f32 %v126, %v158
    %v167 = vadd.f32 %v127, %v159
    %v168 = vadd.f32 %v128, %v160
    %v169 = vadd.f32 %v129, %v161
    %v170 = vadd.f32 %v130, %v162
    %v171 = vadd.f32 %v131, %v163
    %v172 = vadd.f32 %v132, %v164
    %v173 = vadd.f32 %v133, %v165
    %174 = vset.pattern.permute.xlu0 3
    %175 = vperm.xlu0 %174, %v33
    %v176 = vpop.permute.xlu0 %175
    %178 = vset.pattern.permute.xlu0 3
    %179 = vperm.xlu0 %178, %v34
    %v180 = vpop.permute.xlu0 %179
    %182 = vset.pattern.permute.xlu0 3
    %183 = vperm.xlu0 %182, %v35
    %v184 = vpop.permute.xlu0 %183
    %186 = vset.pattern.permute.xlu0 3
    %187 = vperm.xlu0 %186, %v36
    %v188 = vpop.permute.xlu0 %187
    %v190 = vlaneseq
    %v191 = vshrl.u32 %v190, 7
    %v192 = vsub.s32 3, %v191
    %v193 = vrot.slane %v38, %v192
    %v194 = vlaneseq
    %v195 = vshrl.u32 %v194, 7
    %v196 = vsub.s32 3, %v195
    %v197 = vrot.slane %v39, %v196
    %v198 = vmul.f32 %v176, %v193
    %v199 = vmul.f32 %v176, %v197
    %v200 = vmul.f32 %v180, %v193
    %v201 = vmul.f32 %v180, %v197
    %v202 = vmul.f32 %v184, %v193
    %v203 = vmul.f32 %v184, %v197
    %v204 = vmul.f32 %v188, %v193
    %v205 = vmul.f32 %v188, %v197
    %v206 = vadd.f32 %v166, %v198
    %v207 = vadd.f32 %v167, %v199
    %v208 = vadd.f32 %v168, %v200
    %v209 = vadd.f32 %v169, %v201
    %v210 = vadd.f32 %v170, %v202
    %v211 = vadd.f32 %v171, %v203
    %v212 = vadd.f32 %v172, %v204
    %v213 = vadd.f32 %v173, %v205
    %v214 = vmax.f32 %v206, 0.0
    %v215 = vmax.f32 %v207, 0.0
    %v216 = vmax.f32 %v208, 0.0
    %v217 = vmax.f32 %v209, 0.0
    %v218 = vmax.f32 %v210, 0.0
    %v219 = vmax.f32 %v211, 0.0
    %v220 = vmax.f32 %v212, 0.0
    %v221 = vmax.f32 %v213, 0.0
    %v222 = vpack.c.bf16 %v216, %v214
    %v223 = vpack.c.bf16 %v217, %v215
    %v224 = vpack.c.bf16 %v220, %v218
    %v225 = vpack.c.bf16 %v221, %v219
    %v226 = vld [vmem:[#allocation2] sm:$0xff]
    %v227 = vld [vmem:[#allocation2 + $0x14] sm:$0xff]
    %v228 = vld [vmem:[#allocation2 + $0x28] sm:$0xff]
    %v229 = vld [vmem:[#allocation2 + $0x3c] sm:$0xff]
    %v230 = vld [vmem:[#allocation2 + $0x50] sm:$0xff]
    %v231 = vld [vmem:[#allocation2 + $0x64] sm:$0xff]
    %v232 = vld [vmem:[#allocation2 + $0x78] sm:$0xff]
    %v233 = vld [vmem:[#allocation2 + $0x8c] sm:$0xff]
    %v234 = vld [vmem:[#allocation2 + $0xa0] sm:$0xff]
    %v235 = vld [vmem:[#allocation2 + $0xb4] sm:$0xff]
    %v236 = vld [vmem:[#allocation2 + $0xc8] sm:$0xff]
    %v237 = vld [vmem:[#allocation2 + $0xdc] sm:$0xff]
    %v238 = vld [vmem:[#allocation2 + $0xf0] sm:$0xff]
    %v239 = vld [vmem:[#allocation2 + $0x104] sm:$0xff]
    %v240 = vld [vmem:[#allocation2 + $0x118] sm:$0xff]
    %v241 = vld [vmem:[#allocation2 + $0x12c] sm:$0xff]
    %v242 = vld [vmem:[#allocation2 + $0x140] sm:$0xff]
    %v243 = vld [vmem:[#allocation2 + $0x154] sm:$0xff]
    %v244 = vld [vmem:[#allocation2 + $0x168] sm:$0xff]
    %v245 = vld [vmem:[#allocation2 + $0x17c] sm:$0xff]
    %v246 = vld [vmem:[#allocation2 + $0x190] sm:$0xff]
    %v247 = vld [vmem:[#allocation2 + $0x1a4] sm:$0xff]
    %v248 = vld [vmem:[#allocation2 + $0x1b8] sm:$0xff]
    %v249 = vld [vmem:[#allocation2 + $0x1cc] sm:$0xff]
    %v250 = vld [vmem:[#allocation2 + $0x1e0] sm:$0xff]
    %v251 = vld [vmem:[#allocation2 + $0x1f4] sm:$0xff]
    %v252 = vld [vmem:[#allocation2 + $0x208] sm:$0xff]
    %v253 = vld [vmem:[#allocation2 + $0x21c] sm:$0xff]
    %v254 = vld [vmem:[#allocation2 + $0x230] sm:$0xff]
    %v255 = vld [vmem:[#allocation2 + $0x244] sm:$0xff]
    %v256 = vld [vmem:[#allocation2 + $0x258] sm:$0xff]
    %v257 = vld [vmem:[#allocation2 + $0x26c] sm:$0xff]
    %v258 = vlaneseq
    %v259 = vshrl.u32 %v258, 7
    %v260 = vsub.s32 1, %v259
    %v261 = vrot.slane %v40, %v260
    %v262 = vlaneseq
    %v263 = vshrl.u32 %v262, 7
    %v264 = vsub.s32 1, %v263
    %v265 = vrot.slane %v41, %v264
    %v298 = vunpack.c.l.b16 %v226
    %v299 = vunpack.c.h.b16 %v226
    %v300 = vunpack.c.l.b16 %v227
    %v301 = vunpack.c.h.b16 %v227
    %v302 = vunpack.c.l.b16 %v228
    %v303 = vunpack.c.h.b16 %v228
    %v304 = vunpack.c.l.b16 %v229
    %v305 = vunpack.c.h.b16 %v229
    %v306 = vunpack.c.l.b16 %v230
    %v307 = vunpack.c.h.b16 %v230
    %v308 = vunpack.c.l.b16 %v231
    %v309 = vunpack.c.h.b16 %v231
    %v310 = vunpack.c.l.b16 %v232
    %v311 = vunpack.c.h.b16 %v232
    %v312 = vunpack.c.l.b16 %v233
    %v313 = vunpack.c.h.b16 %v233
    %v314 = vunpack.c.l.b16 %v234
    %v315 = vunpack.c.h.b16 %v234
    %v316 = vunpack.c.l.b16 %v235
    %v317 = vunpack.c.h.b16 %v235
    %v318 = vunpack.c.l.b16 %v236
    %v319 = vunpack.c.h.b16 %v236
    %v320 = vunpack.c.l.b16 %v237
    %v321 = vunpack.c.h.b16 %v237
    %v322 = vunpack.c.l.b16 %v238
    %v323 = vunpack.c.h.b16 %v238
    %v324 = vunpack.c.l.b16 %v239
    %v325 = vunpack.c.h.b16 %v239
    %v326 = vunpack.c.l.b16 %v240
    %v327 = vunpack.c.h.b16 %v240
    %v328 = vunpack.c.l.b16 %v241
    %v329 = vunpack.c.h.b16 %v241
    %v330 = vunpack.c.l.b16 %v242
    %v331 = vunpack.c.h.b16 %v242
    %v332 = vunpack.c.l.b16 %v243
    %v333 = vunpack.c.h.b16 %v243
    %v334 = vunpack.c.l.b16 %v244
    %v335 = vunpack.c.h.b16 %v244
    %v336 = vunpack.c.l.b16 %v245
    %v337 = vunpack.c.h.b16 %v245
    %v338 = vunpack.c.l.b16 %v246
    %v339 = vunpack.c.h.b16 %v246
    %v340 = vunpack.c.l.b16 %v247
    %v341 = vunpack.c.h.b16 %v247
    %v342 = vunpack.c.l.b16 %v248
    %v343 = vunpack.c.h.b16 %v248
    %v344 = vunpack.c.l.b16 %v249
    %v345 = vunpack.c.h.b16 %v249
    %v346 = vunpack.c.l.b16 %v250
    %v347 = vunpack.c.h.b16 %v250
    %v348 = vunpack.c.l.b16 %v251
    %v349 = vunpack.c.h.b16 %v251
    %v350 = vunpack.c.l.b16 %v252
    %v351 = vunpack.c.h.b16 %v252
    %v352 = vunpack.c.l.b16 %v253
    %v353 = vunpack.c.h.b16 %v253
    %v354 = vunpack.c.l.b16 %v254
    %v355 = vunpack.c.h.b16 %v254
    %v356 = vunpack.c.l.b16 %v255
    %v357 = vunpack.c.h.b16 %v255
    %v358 = vunpack.c.l.b16 %v256
    %v359 = vunpack.c.h.b16 %v256
    %v360 = vunpack.c.l.b16 %v257
    %v361 = vunpack.c.h.b16 %v257
    %v362 = vpack.c.b16 %v300, %v298
    %v363 = vpack.c.b16 %v301, %v299
    %v364 = vpack.c.b16 %v304, %v302
    %v365 = vpack.c.b16 %v305, %v303
    %v366 = vpack.c.b16 %v308, %v306
    %v367 = vpack.c.b16 %v309, %v307
    %v368 = vpack.c.b16 %v312, %v310
    %v369 = vpack.c.b16 %v313, %v311
    %v370 = vpack.c.b16 %v316, %v314
    %v371 = vpack.c.b16 %v317, %v315
    %v372 = vpack.c.b16 %v320, %v318
    %v373 = vpack.c.b16 %v321, %v319
    %v374 = vpack.c.b16 %v324, %v322
    %v375 = vpack.c.b16 %v325, %v323
    %v376 = vpack.c.b16 %v328, %v326
    %v377 = vpack.c.b16 %v329, %v327
    %v378 = vpack.c.b16 %v332, %v330
    %v379 = vpack.c.b16 %v333, %v331
    %v380 = vpack.c.b16 %v336, %v334
    %v381 = vpack.c.b16 %v337, %v335
    %v382 = vpack.c.b16 %v340, %v338
    %v383 = vpack.c.b16 %v341, %v339
    %v384 = vpack.c.b16 %v344, %v342
    %v385 = vpack.c.b16 %v345, %v343
    %v386 = vpack.c.b16 %v348, %v346
    %v387 = vpack.c.b16 %v349, %v347
    %v388 = vpack.c.b16 %v352, %v350
    %v389 = vpack.c.b16 %v353, %v351
    %v390 = vpack.c.b16 %v356, %v354
    %v391 = vpack.c.b16 %v357, %v355
    %v392 = vpack.c.b16 %v360, %v358
    %v393 = vpack.c.b16 %v361, %v359
    %426 = vmatprep.subr.bf16.mxu0 %v377
    %427 = vmatpush1.bf16.msra.mxu0 %v376
    %428 = vmatprep.subr.bf16.mxu0 %v375
    %429 = vmatpush1.bf16.msra.mxu0 %v374
    %430 = vmatprep.subr.bf16.mxu0 %v373
    %431 = vmatpush1.bf16.msra.mxu0 %v372
    %432 = vmatprep.subr.bf16.mxu0 %v371
    %433 = vmatpush1.bf16.msra.mxu0 %v370
    %434 = vmatprep.subr.bf16.mxu0 %v369
    %435 = vmatpush1.bf16.msra.mxu0 %v368
    %436 = vmatprep.subr.bf16.mxu0 %v367
    %437 = vmatpush1.bf16.msra.mxu0 %v366
    %438 = vmatprep.subr.bf16.mxu0 %v365
    %439 = vmatpush1.bf16.msra.mxu0 %v364
    %440 = vmatprep.subr.bf16.mxu0 %v363
    %441 = vmatpush1.bf16.msra.mxu0 %v362
    %442 = vmatprep.subr.bf16.mxu0 %v393
    %443 = vmatpush2.bf16.msra.mxu0 %v392
    %444 = vmatprep.subr.bf16.mxu0 %v391
    %445 = vmatpush2.bf16.msra.mxu0 %v390
    %446 = vmatprep.subr.bf16.mxu0 %v389
    %447 = vmatpush2.bf16.msra.mxu0 %v388
    %448 = vmatprep.subr.bf16.mxu0 %v387
    %449 = vmatpush2.bf16.msra.mxu0 %v386
    %450 = vmatprep.subr.bf16.mxu0 %v385
    %451 = vmatpush2.bf16.msra.mxu0 %v384
    %452 = vmatprep.subr.bf16.mxu0 %v383
    %453 = vmatpush2.bf16.msra.mxu0 %v382
    %454 = vmatprep.subr.bf16.mxu0 %v381
    %455 = vmatpush2.bf16.msra.mxu0 %v380
    %456 = vmatprep.subr.bf16.mxu0 %v379
    %457 = vmatpush2.bf16.msra.mxu0 %v378
    %458 = vmatprep.mubr.bf16.mxu0 %v223
    %459 = vmatmul.mubr.bf16.gmra.mxu0 %v222
    %v460 = vpop.f32.mrf.mxu0
    %v461 = vadd.f32 %v261, %v460
    %v462 = vpop.f32.mrf.mxu0
    %v463 = vadd.f32 %v265, %v462
    %v464 = vpop.f32.mrf.mxu0
    %v465 = vadd.f32 %v261, %v464
    %v466 = vpop.f32.mrf.mxu0
    %v467 = vadd.f32 %v265, %v466
    %468 = vmatprep.mubr.bf16.mxu0 %v225
    %469 = vmatmul.mubr.bf16.gmra.mxu0 %v224
    %v470 = vpop.f32.mrf.mxu0
    %v471 = vadd.f32 %v261, %v470
    %v472 = vpop.f32.mrf.mxu0
    %v473 = vadd.f32 %v265, %v472
    %v474 = vpop.f32.mrf.mxu0
    %v475 = vadd.f32 %v261, %v474
    %v476 = vpop.f32.mrf.mxu0
    %v477 = vadd.f32 %v265, %v476
    %478 = vdwg.mxu0
    %v479 = vmax.f32 %v461, 0.0
    %v480 = vmax.f32 %v463, 0.0
    %v481 = vmax.f32 %v465, 0.0
    %v482 = vmax.f32 %v467, 0.0
    %v483 = vmax.f32 %v471, 0.0
    %v484 = vmax.f32 %v473, 0.0
    %v485 = vmax.f32 %v475, 0.0
    %v486 = vmax.f32 %v477, 0.0
    %v487 = vpack.c.bf16 %v481, %v479
    %v488 = vpack.c.bf16 %v482, %v480
    %v489 = vpack.c.bf16 %v485, %v483
    %v490 = vpack.c.bf16 %v486, %v484
    %v491 = vld [vmem:[#allocation2 + $0x8] sm:$0xff]
    %v492 = vld [vmem:[#allocation2 + $0x1c] sm:$0xff]
    %v493 = vld [vmem:[#allocation2 + $0x30] sm:$0xff]
    %v494 = vld [vmem:[#allocation2 + $0x44] sm:$0xff]
    %v495 = vld [vmem:[#allocation2 + $0x58] sm:$0xff]
    %v496 = vld [vmem:[#allocation2 + $0x6c] sm:$0xff]
    %v497 = vld [vmem:[#allocation2 + $0x80] sm:$0xff]
    %v498 = vld [vmem:[#allocation2 + $0x94] sm:$0xff]
    %v499 = vld [vmem:[#allocation2 + $0xa8] sm:$0xff]
    %v500 = vld [vmem:[#allocation2 + $0xbc] sm:$0xff]
    %v501 = vld [vmem:[#allocation2 + $0xd0] sm:$0xff]
    %v502 = vld [vmem:[#allocation2 + $0xe4] sm:$0xff]
    %v503 = vld [vmem:[#allocation2 + $0xf8] sm:$0xff]
    %v504 = vld [vmem:[#allocation2 + $0x10c] sm:$0xff]
    %v505 = vld [vmem:[#allocation2 + $0x120] sm:$0xff]
    %v506 = vld [vmem:[#allocation2 + $0x134] sm:$0xff]
    %v507 = vld [vmem:[#allocation2 + $0x148] sm:$0xff]
    %v508 = vld [vmem:[#allocation2 + $0x15c] sm:$0xff]
    %v509 = vld [vmem:[#allocation2 + $0x170] sm:$0xff]
    %v510 = vld [vmem:[#allocation2 + $0x184] sm:$0xff]
    %v511 = vld [vmem:[#allocation2 + $0x198] sm:$0xff]
    %v512 = vld [vmem:[#allocation2 + $0x1ac] sm:$0xff]
    %v513 = vld [vmem:[#allocation2 + $0x1c0] sm:$0xff]
    %v514 = vld [vmem:[#allocation2 + $0x1d4] sm:$0xff]
    %v515 = vld [vmem:[#allocation2 + $0x1e8] sm:$0xff]
    %v516 = vld [vmem:[#allocation2 + $0x1fc] sm:$0xff]
    %v517 = vld [vmem:[#allocation2 + $0x210] sm:$0xff]
    %v518 = vld [vmem:[#allocation2 + $0x224] sm:$0xff]
    %v519 = vld [vmem:[#allocation2 + $0x238] sm:$0xff]
    %v520 = vld [vmem:[#allocation2 + $0x24c] sm:$0xff]
    %v521 = vld [vmem:[#allocation2 + $0x260] sm:$0xff]
    %v522 = vld [vmem:[#allocation2 + $0x274] sm:$0xff]
    %v523 = vlaneseq
    %v524 = vshrl.u32 %v523, 7
    %v525 = vsub.s32 2, %v524
    %v526 = vrot.slane %v40, %v525
    %v527 = vlaneseq
    %v528 = vshrl.u32 %v527, 7
    %v529 = vsub.s32 2, %v528
    %v530 = vrot.slane %v41, %v529
    %v563 = vunpack.c.l.b16 %v491
    %v564 = vunpack.c.h.b16 %v491
    %v565 = vunpack.c.l.b16 %v492
    %v566 = vunpack.c.h.b16 %v492
    %v567 = vunpack.c.l.b16 %v493
    %v568 = vunpack.c.h.b16 %v493
    %v569 = vunpack.c.l.b16 %v494
    %v570 = vunpack.c.h.b16 %v494
    %v571 = vunpack.c.l.b16 %v495
    %v572 = vunpack.c.h.b16 %v495
    %v573 = vunpack.c.l.b16 %v496
    %v574 = vunpack.c.h.b16 %v496
    %v575 = vunpack.c.l.b16 %v497
    %v576 = vunpack.c.h.b16 %v497
    %v577 = vunpack.c.l.b16 %v498
    %v578 = vunpack.c.h.b16 %v498
    %v579 = vunpack.c.l.b16 %v499
    %v580 = vunpack.c.h.b16 %v499
    %v581 = vunpack.c.l.b16 %v500
    %v582 = vunpack.c.h.b16 %v500
    %v583 = vunpack.c.l.b16 %v501
    %v584 = vunpack.c.h.b16 %v501
    %v585 = vunpack.c.l.b16 %v502
    %v586 = vunpack.c.h.b16 %v502
    %v587 = vunpack.c.l.b16 %v503
    %v588 = vunpack.c.h.b16 %v503
    %v589 = vunpack.c.l.b16 %v504
    %v590 = vunpack.c.h.b16 %v504
    %v591 = vunpack.c.l.b16 %v505
    %v592 = vunpack.c.h.b16 %v505
    %v593 = vunpack.c.l.b16 %v506
    %v594 = vunpack.c.h.b16 %v506
    %v595 = vunpack.c.l.b16 %v507
    %v596 = vunpack.c.h.b16 %v507
    %v597 = vunpack.c.l.b16 %v508
    %v598 = vunpack.c.h.b16 %v508
    %v599 = vunpack.c.l.b16 %v509
    %v600 = vunpack.c.h.b16 %v509
    %v601 = vunpack.c.l.b16 %v510
    %v602 = vunpack.c.h.b16 %v510
    %v603 = vunpack.c.l.b16 %v511
    %v604 = vunpack.c.h.b16 %v511
    %v605 = vunpack.c.l.b16 %v512
    %v606 = vunpack.c.h.b16 %v512
    %v607 = vunpack.c.l.b16 %v513
    %v608 = vunpack.c.h.b16 %v513
    %v609 = vunpack.c.l.b16 %v514
    %v610 = vunpack.c.h.b16 %v514
    %v611 = vunpack.c.l.b16 %v515
    %v612 = vunpack.c.h.b16 %v515
    %v613 = vunpack.c.l.b16 %v516
    %v614 = vunpack.c.h.b16 %v516
    %v615 = vunpack.c.l.b16 %v517
    %v616 = vunpack.c.h.b16 %v517
    %v617 = vunpack.c.l.b16 %v518
    %v618 = vunpack.c.h.b16 %v518
    %v619 = vunpack.c.l.b16 %v519
    %v620 = vunpack.c.h.b16 %v519
    %v621 = vunpack.c.l.b16 %v520
    %v622 = vunpack.c.h.b16 %v520
    %v623 = vunpack.c.l.b16 %v521
    %v624 = vunpack.c.h.b16 %v521
    %v625 = vunpack.c.l.b16 %v522
    %v626 = vunpack.c.h.b16 %v522
    %v627 = vpack.c.b16 %v565, %v563
    %v628 = vpack.c.b16 %v566, %v564
    %v629 = vpack.c.b16 %v569, %v567
    %v630 = vpack.c.b16 %v570, %v568
    %v631 = vpack.c.b16 %v573, %v571
    %v632 = vpack.c.b16 %v574, %v572
    %v633 = vpack.c.b16 %v577, %v575
    %v634 = vpack.c.b16 %v578, %v576
    %v635 = vpack.c.b16 %v581, %v579
    %v636 = vpack.c.b16 %v582, %v580
    %v637 = vpack.c.b16 %v585, %v583
    %v638 = vpack.c.b16 %v586, %v584
    %v639 = vpack.c.b16 %v589, %v587
    %v640 = vpack.c.b16 %v590, %v588
    %v641 = vpack.c.b16 %v593, %v591
    %v642 = vpack.c.b16 %v594, %v592
    %v643 = vpack.c.b16 %v597, %v595
    %v644 = vpack.c.b16 %v598, %v596
    %v645 = vpack.c.b16 %v601, %v599
    %v646 = vpack.c.b16 %v602, %v600
    %v647 = vpack.c.b16 %v605, %v603
    %v648 = vpack.c.b16 %v606, %v604
    %v649 = vpack.c.b16 %v609, %v607
    %v650 = vpack.c.b16 %v610, %v608
    %v651 = vpack.c.b16 %v613, %v611
    %v652 = vpack.c.b16 %v614, %v612
    %v653 = vpack.c.b16 %v617, %v615
    %v654 = vpack.c.b16 %v618, %v616
    %v655 = vpack.c.b16 %v621, %v619
    %v656 = vpack.c.b16 %v622, %v620
    %v657 = vpack.c.b16 %v625, %v623
    %v658 = vpack.c.b16 %v626, %v624
    %691 = vmatprep.subr.bf16.mxu0 %v642
    %692 = vmatpush1.bf16.msra.mxu0 %v641
    %693 = vmatprep.subr.bf16.mxu0 %v640
    %694 = vmatpush1.bf16.msra.mxu0 %v639
    %695 = vmatprep.subr.bf16.mxu0 %v638
    %696 = vmatpush1.bf16.msra.mxu0 %v637
    %697 = vmatprep.subr.bf16.mxu0 %v636
    %698 = vmatpush1.bf16.msra.mxu0 %v635
    %699 = vmatprep.subr.bf16.mxu0 %v634
    %700 = vmatpush1.bf16.msra.mxu0 %v633
    %701 = vmatprep.subr.bf16.mxu0 %v632
    %702 = vmatpush1.bf16.msra.mxu0 %v631
    %703 = vmatprep.subr.bf16.mxu0 %v630
    %704 = vmatpush1.bf16.msra.mxu0 %v629
    %705 = vmatprep.subr.bf16.mxu0 %v628
    %706 = vmatpush1.bf16.msra.mxu0 %v627
    %707 = vmatprep.subr.bf16.mxu0 %v658
    %708 = vmatpush2.bf16.msra.mxu0 %v657
    %709 = vmatprep.subr.bf16.mxu0 %v656
    %710 = vmatpush2.bf16.msra.mxu0 %v655
    %711 = vmatprep.subr.bf16.mxu0 %v654
    %712 = vmatpush2.bf16.msra.mxu0 %v653
    %713 = vmatprep.subr.bf16.mxu0 %v652
    %714 = vmatpush2.bf16.msra.mxu0 %v651
    %715 = vmatprep.subr.bf16.mxu0 %v650
    %716 = vmatpush2.bf16.msra.mxu0 %v649
    %717 = vmatprep.subr.bf16.mxu0 %v648
    %718 = vmatpush2.bf16.msra.mxu0 %v647
    %719 = vmatprep.subr.bf16.mxu0 %v646
    %720 = vmatpush2.bf16.msra.mxu0 %v645
    %721 = vmatprep.subr.bf16.mxu0 %v644
    %722 = vmatpush2.bf16.msra.mxu0 %v643
    %723 = vmatprep.mubr.bf16.mxu0 %v488
    %724 = vmatmul.mubr.bf16.gmra.mxu0 %v487
    %v725 = vpop.f32.mrf.mxu0
    %v726 = vadd.f32 %v526, %v725
    %v727 = vpop.f32.mrf.mxu0
    %v728 = vadd.f32 %v530, %v727
    %v729 = vpop.f32.mrf.mxu0
    %v730 = vadd.f32 %v526, %v729
    %v731 = vpop.f32.mrf.mxu0
    %v732 = vadd.f32 %v530, %v731
    %733 = vmatprep.mubr.bf16.mxu0 %v490
    %734 = vmatmul.mubr.bf16.gmra.mxu0 %v489
    %v735 = vpop.f32.mrf.mxu0
    %v736 = vadd.f32 %v526, %v735
    %v737 = vpop.f32.mrf.mxu0
    %v738 = vadd.f32 %v530, %v737
    %v739 = vpop.f32.mrf.mxu0
    %v740 = vadd.f32 %v526, %v739
    %v741 = vpop.f32.mrf.mxu0
    %v742 = vadd.f32 %v530, %v741
    %743 = vdwg.mxu0
    %v744 = vmax.f32 %v726, 0.0
    %v745 = vmax.f32 %v728, 0.0
    %v746 = vmax.f32 %v730, 0.0
    %v747 = vmax.f32 %v732, 0.0
    %v748 = vmax.f32 %v736, 0.0
    %v749 = vmax.f32 %v738, 0.0
    %v750 = vmax.f32 %v740, 0.0
    %v751 = vmax.f32 %v742, 0.0
    %v752 = vpack.c.bf16 %v746, %v744
    %v753 = vpack.c.bf16 %v747, %v745
    %v754 = vpack.c.bf16 %v750, %v748
    %v755 = vpack.c.bf16 %v751, %v749
    %v756 = vld [vmem:[#allocation2 + $0x10] sm:$0xf]
    %v757 = vld [vmem:[#allocation2 + $0x24] sm:$0xf]
    %v758 = vld [vmem:[#allocation2 + $0x38] sm:$0xf]
    %v759 = vld [vmem:[#allocation2 + $0x4c] sm:$0xf]
    %v760 = vld [vmem:[#allocation2 + $0x60] sm:$0xf]
    %v761 = vld [vmem:[#allocation2 + $0x74] sm:$0xf]
    %v762 = vld [vmem:[#allocation2 + $0x88] sm:$0xf]
    %v763 = vld [vmem:[#allocation2 + $0x9c] sm:$0xf]
    %v764 = vld [vmem:[#allocation2 + $0xb0] sm:$0xf]
    %v765 = vld [vmem:[#allocation2 + $0xc4] sm:$0xf]
    %v766 = vld [vmem:[#allocation2 + $0xd8] sm:$0xf]
    %v767 = vld [vmem:[#allocation2 + $0xec] sm:$0xf]
    %v768 = vld [vmem:[#allocation2 + $0x100] sm:$0xf]
    %v769 = vld [vmem:[#allocation2 + $0x114] sm:$0xf]
    %v770 = vld [vmem:[#allocation2 + $0x128] sm:$0xf]
    %v771 = vld [vmem:[#allocation2 + $0x13c] sm:$0xf]
    %v772 = vld [vmem:[#allocation2 + $0x150] sm:$0xf]
    %v773 = vld [vmem:[#allocation2 + $0x164] sm:$0xf]
    %v774 = vld [vmem:[#allocation2 + $0x178] sm:$0xf]
    %v775 = vld [vmem:[#allocation2 + $0x18c] sm:$0xf]
    %v776 = vld [vmem:[#allocation2 + $0x1a0] sm:$0xf]
    %v777 = vld [vmem:[#allocation2 + $0x1b4] sm:$0xf]
    %v778 = vld [vmem:[#allocation2 + $0x1c8] sm:$0xf]
    %v779 = vld [vmem:[#allocation2 + $0x1dc] sm:$0xf]
    %v780 = vld [vmem:[#allocation2 + $0x1f0] sm:$0xf]
    %v781 = vld [vmem:[#allocation2 + $0x204] sm:$0xf]
    %v782 = vld [vmem:[#allocation2 + $0x218] sm:$0xf]
    %v783 = vld [vmem:[#allocation2 + $0x22c] sm:$0xf]
    %v784 = vld [vmem:[#allocation2 + $0x240] sm:$0xf]
    %v785 = vld [vmem:[#allocation2 + $0x254] sm:$0xf]
    %v786 = vld [vmem:[#allocation2 + $0x268] sm:$0xf]
    %v787 = vld [vmem:[#allocation2 + $0x27c] sm:$0xf]
    %v788 = vlaneseq
    %v789 = vshrl.u32 %v788, 7
    %v790 = vsub.s32 3, %v789
    %v791 = vrot.slane %v40, %v790
    %v824 = vunpack.c.l.b16 %v756
    %v825 = vunpack.c.l.b16 %v757
    %v826 = vunpack.c.l.b16 %v758
    %v827 = vunpack.c.l.b16 %v759
    %v828 = vunpack.c.l.b16 %v760
    %v829 = vunpack.c.l.b16 %v761
    %v830 = vunpack.c.l.b16 %v762
    %v831 = vunpack.c.l.b16 %v763
    %v832 = vunpack.c.l.b16 %v764
    %v833 = vunpack.c.l.b16 %v765
    %v834 = vunpack.c.l.b16 %v766
    %v835 = vunpack.c.l.b16 %v767
    %v836 = vunpack.c.l.b16 %v768
    %v837 = vunpack.c.l.b16 %v769
    %v838 = vunpack.c.l.b16 %v770
    %v839 = vunpack.c.l.b16 %v771
    %v840 = vunpack.c.l.b16 %v772
    %v841 = vunpack.c.l.b16 %v773
    %v842 = vunpack.c.l.b16 %v774
    %v843 = vunpack.c.l.b16 %v775
    %v844 = vunpack.c.l.b16 %v776
    %v845 = vunpack.c.l.b16 %v777
    %v846 = vunpack.c.l.b16 %v778
    %v847 = vunpack.c.l.b16 %v779
    %v848 = vunpack.c.l.b16 %v780
    %v849 = vunpack.c.l.b16 %v781
    %v850 = vunpack.c.l.b16 %v782
    %v851 = vunpack.c.l.b16 %v783
    %v852 = vunpack.c.l.b16 %v784
    %v853 = vunpack.c.l.b16 %v785
    %v854 = vunpack.c.l.b16 %v786
    %v855 = vunpack.c.l.b16 %v787
    %v856 = vpack.c.b16 %v825, %v824
    %v857 = vpack.c.b16 %v827, %v826
    %v858 = vpack.c.b16 %v829, %v828
    %v859 = vpack.c.b16 %v831, %v830
    %v860 = vpack.c.b16 %v833, %v832
    %v861 = vpack.c.b16 %v835, %v834
    %v862 = vpack.c.b16 %v837, %v836
    %v863 = vpack.c.b16 %v839, %v838
    %v864 = vpack.c.b16 %v841, %v840
    %v865 = vpack.c.b16 %v843, %v842
    %v866 = vpack.c.b16 %v845, %v844
    %v867 = vpack.c.b16 %v847, %v846
    %v868 = vpack.c.b16 %v849, %v848
    %v869 = vpack.c.b16 %v851, %v850
    %v870 = vpack.c.b16 %v853, %v852
    %v871 = vpack.c.b16 %v855, %v854
    %888 = vmatprep.subr.bf16.mxu0 0
    %889 = vmatpush1.bf16.msra.mxu0 %v863
    %890 = vmatprep.subr.bf16.mxu0 0
    %891 = vmatpush1.bf16.msra.mxu0 %v862
    %892 = vmatprep.subr.bf16.mxu0 0
    %893 = vmatpush1.bf16.msra.mxu0 %v861
    %894 = vmatprep.subr.bf16.mxu0 0
    %895 = vmatpush1.bf16.msra.mxu0 %v860
    %896 = vmatprep.subr.bf16.mxu0 0
    %897 = vmatpush1.bf16.msra.mxu0 %v859
    %898 = vmatprep.subr.bf16.mxu0 0
    %899 = vmatpush1.bf16.msra.mxu0 %v858
    %900 = vmatprep.subr.bf16.mxu0 0
    %901 = vmatpush1.bf16.msra.mxu0 %v857
    %902 = vmatprep.subr.bf16.mxu0 0
    %903 = vmatpush1.bf16.msra.mxu0 %v856
    %904 = vmatprep.subr.bf16.mxu0 0
    %905 = vmatpush2.bf16.msra.mxu0 %v871
    %906 = vmatprep.subr.bf16.mxu0 0
    %907 = vmatpush2.bf16.msra.mxu0 %v870
    %908 = vmatprep.subr.bf16.mxu0 0
    %909 = vmatpush2.bf16.msra.mxu0 %v869
    %910 = vmatprep.subr.bf16.mxu0 0
    %911 = vmatpush2.bf16.msra.mxu0 %v868
    %912 = vmatprep.subr.bf16.mxu0 0
    %913 = vmatpush2.bf16.msra.mxu0 %v867
    %914 = vmatprep.subr.bf16.mxu0 0
    %915 = vmatpush2.bf16.msra.mxu0 %v866
    %916 = vmatprep.subr.bf16.mxu0 0
    %917 = vmatpush2.bf16.msra.mxu0 %v865
    %918 = vmatprep.subr.bf16.mxu0 0
    %919 = vmatpush2.bf16.msra.mxu0 %v864
    %920 = vmatprep.mubr.bf16.mxu0 %v753
    %921 = vmatmul.mubr.bf16.gmra.mxu0 %v752
    %v922 = vpop.f32.mrf.mxu0
    %v923 = vadd.f32 %v791, %v922
    %v924 = vpop.f32.mrf.mxu0
    %v925 = vpop.f32.mrf.mxu0
    %v926 = vadd.f32 %v791, %v925
    %v927 = vpop.f32.mrf.mxu0
    %928 = vmatprep.mubr.bf16.mxu0 %v755
    %929 = vmatmul.mubr.bf16.gmra.mxu0 %v754
    %v930 = vpop.f32.mrf.mxu0
    %v931 = vadd.f32 %v791, %v930
    %v932 = vpop.f32.mrf.mxu0
    %v933 = vpop.f32.mrf.mxu0
    %v934 = vadd.f32 %v791, %v933
    %v935 = vpop.f32.mrf.mxu0
    %936 = vdwg.mxu0
    %v937 = vlaneseq
    %v938 = vand.u32 %v937, 127
    %vm939 = vcmp.lt.s32.totalorder %v938, 51
    %vm940 = vcmp.ge.s32.totalorder %v938, 51
    %vm941 = vcmp.lt.s32.totalorder %v938, 102
    %vm942 = vmand %vm940, %vm941
    %v943 = vsel %vm939, %v923, -1e+30
    %v944 = vsel %vm939, %v926, -1e+30
    %v945 = vsel %vm939, %v931, -1e+30
    %v946 = vsel %vm939, %v934, -1e+30
    %947 = vmax.xlane.f32.xlu0 %v943
    %v948 = vpop.xlane.xlu0 %947
    %949 = vmax.xlane.f32.xlu0 %v944
    %v950 = vpop.xlane.xlu0 %949
    %951 = vmax.xlane.f32.xlu0 %v945
    %v952 = vpop.xlane.xlu0 %951
    %953 = vmax.xlane.f32.xlu0 %v946
    %v954 = vpop.xlane.xlu0 %953
    %v955 = vsel %vm942, %v923, -1e+30
    %v956 = vsel %vm942, %v926, -1e+30
    %v957 = vsel %vm942, %v931, -1e+30
    %v958 = vsel %vm942, %v934, -1e+30
    %959 = vmax.xlane.f32.xlu0 %v955
    %v960 = vpop.xlane.xlu0 %959
    %961 = vmax.xlane.f32.xlu0 %v956
    %v962 = vpop.xlane.xlu0 %961
    %963 = vmax.xlane.f32.xlu0 %v957
    %v964 = vpop.xlane.xlu0 %963
    %965 = vmax.xlane.f32.xlu0 %v958
    %v966 = vpop.xlane.xlu0 %965
    %v967 = vsel %vm939, %v948, %v960
    %v968 = vsel %vm939, %v950, %v962
    %v969 = vsel %vm939, %v952, %v964
    %v970 = vsel %vm939, %v954, %v966
    %v971 = vsub.f32 %v923, %v967
    %v972 = vsub.f32 %v926, %v968
    %v973 = vsub.f32 %v931, %v969
    %v974 = vsub.f32 %v934, %v970
    %v975 = vmul.f32 %v971, 1.442695
    %v976 = vpow.pop %v975
    %v977 = vmul.f32 %v972, 1.442695
    %v978 = vpow.pop %v977
    %v979 = vmul.f32 %v973, 1.442695
    %v980 = vpow.pop %v979
    %v981 = vmul.f32 %v974, 1.442695
    %v982 = vpow.pop %v981
    %v983 = vsel %vm939, %v976, 0.0
    %v984 = vsel %vm939, %v978, 0.0
    %v985 = vsel %vm939, %v980, 0.0
    %v986 = vsel %vm939, %v982, 0.0
    %987 = vadd.xlane.f32.xlu0 %v983
    %v988 = vpop.xlane.xlu0 %987
    %989 = vadd.xlane.f32.xlu0 %v984
    %v990 = vpop.xlane.xlu0 %989
    %991 = vadd.xlane.f32.xlu0 %v985
    %v992 = vpop.xlane.xlu0 %991
    %993 = vadd.xlane.f32.xlu0 %v986
    %v994 = vpop.xlane.xlu0 %993
    %v995 = vsel %vm942, %v976, 0.0
    %v996 = vsel %vm942, %v978, 0.0
    %v997 = vsel %vm942, %v980, 0.0
    %v998 = vsel %vm942, %v982, 0.0
    %999 = vadd.xlane.f32.xlu0 %v995
    %v1000 = vpop.xlane.xlu0 %999
    %1001 = vadd.xlane.f32.xlu0 %v996
    %v1002 = vpop.xlane.xlu0 %1001
    %1003 = vadd.xlane.f32.xlu0 %v997
    %v1004 = vpop.xlane.xlu0 %1003
    %1005 = vadd.xlane.f32.xlu0 %v998
    %v1006 = vpop.xlane.xlu0 %1005
    %v1007 = vrcp.pop %v988
    %v1008 = vrcp.pop %v990
    %v1009 = vrcp.pop %v992
    %v1010 = vrcp.pop %v994
    %v1011 = vmul.f32 %v988, %v1007
    %v1012 = vmul.f32 %v990, %v1008
    %v1013 = vmul.f32 %v992, %v1009
    %v1014 = vmul.f32 %v994, %v1010
    %v1015 = vsub.f32 2.0, %v1011
    %v1016 = vsub.f32 2.0, %v1012
    %v1017 = vsub.f32 2.0, %v1013
    %v1018 = vsub.f32 2.0, %v1014
    %v1019 = vmul.f32 %v1007, %v1015
    %v1020 = vmul.f32 %v1008, %v1016
    %v1021 = vmul.f32 %v1009, %v1017
    %v1022 = vmul.f32 %v1010, %v1018
    %v1023 = vrcp.pop %v1000
    %v1024 = vrcp.pop %v1002
    %v1025 = vrcp.pop %v1004
    %v1026 = vrcp.pop %v1006
    %v1027 = vmul.f32 %v1000, %v1023
    %v1028 = vmul.f32 %v1002, %v1024
    %v1029 = vmul.f32 %v1004, %v1025
    %v1030 = vmul.f32 %v1006, %v1026
    %v1031 = vsub.f32 2.0, %v1027
    %v1032 = vsub.f32 2.0, %v1028
    %v1033 = vsub.f32 2.0, %v1029
    %v1034 = vsub.f32 2.0, %v1030
    %v1035 = vmul.f32 %v1023, %v1031
    %v1036 = vmul.f32 %v1024, %v1032
    %v1037 = vmul.f32 %v1025, %v1033
    %v1038 = vmul.f32 %v1026, %v1034
    %v1039 = vsel %vm939, %v1019, %v1035
    %v1040 = vsel %vm939, %v1020, %v1036
    %v1041 = vsel %vm939, %v1021, %v1037
    %v1042 = vsel %vm939, %v1022, %v1038
    %v1043 = vmul.f32 %v976, %v1039
    %v1044 = vmul.f32 %v978, %v1040
    %v1045 = vmul.f32 %v980, %v1041
    %v1046 = vmul.f32 %v982, %v1042
    %v1047 = vsel %vm941, %v1043, 0.0
    %v1048 = vsel %vm941, %v1044, 0.0
    %v1049 = vsel %vm941, %v1045, 0.0
    %v1050 = vsel %vm941, %v1046, 0.0
    %1051 = vst [vmem:[#allocation5] sm:$0xff] %v1047
    %1052 = vst [vmem:[#allocation5 + $0x8] sm:$0xff] %v1048
    %1053 = vst [vmem:[#allocation5 + $0x10] sm:$0xff] %v1049
    %1054 = vst [vmem:[#allocation5 + $0x18] sm:$0xff] %v1050
    // Predicated region
    $region22: #{tpu_custom_call.1} parent=1 // pred_check
      _
    $region23: #{tpu_custom_call.1} parent=1 // pred_check_branch
      %1056 = sbr.rel (0) target = $region25
    $region24: #{tpu_custom_call.1} parent=1 // pred_region
      %s1058 = ssub.s32 512, 512
      %1059 = vsyncadd [#allocation4], %s1058
      %s1060 = sshll.u32 [#allocation5], 4
      %s1061 = int_to_ptr.vmem [resolvable:$true] %s1060
      %1066 = dma.vmem_to_hbm [thread:$0]  %s1061, 512, %s4, [#allocation4], 128, 128, 8
    $region25: #{tpu_custom_call.1} parent=1 // pred_fallthru
      _
    // Predicated region
    $region26: #{tpu_custom_call.1} parent=1 // pred_check
      _
    $region27: #{tpu_custom_call.1} parent=1 // pred_check_branch
      %1068 = sbr.rel (0) target = $region29
    $region28: #{tpu_custom_call.1} parent=1 // pred_region
      %1069 = dma.done [#allocation4], 512
    $region29: #{tpu_custom_call.1} parent=1 // pred_fallthru
      _
    %1070 = vsyncpa [#allocation3], 1
    %1071 = vsyncpa [#allocation4], 1

</llo_original>
